<compile_context>
chip_gen: v7x
topology: tpu7x:2x2x1
jax: 0.10.0
libtpu: 0.0.40
codegen_flags: <defaults>
</compile_context>

<pallas_src>
import functools

import jax
import jax.numpy as jnp
from jax.experimental import pallas as pl
from jax.experimental.pallas import tpu as pltpu

GRID_SIZE = 25
IN_FEAT = GRID_SIZE * GRID_SIZE        # 625
HID = 256
OUT = 128
TB_MAX = 1024                          # batch-tile cap (sweep 512-2048)
SUB = 32                               # batch-tile alignment: covers int8
                                       # (32,128) and f32/bf16 (8,128) tiling


def _round_up(x, m):
    return ((x + m - 1) // m) * m


def _pick_batch_tile(n, tb_max):
    """Batch tile: big enough to amortize per-step overhead, small enough to
    avoid wasted edge work, and (when there is enough work) >= 2 grid steps so
    the 'parallel' axis can shard across both v7x TensorCores."""
    if n <= SUB:
        return SUB
    half = _round_up(-(-n // 2), SUB)   # ceil(n/2) rounded to SUB
    return min(tb_max, half)


def facegrid_kernel(x_ref, w1_ref, b1_ref, w2_ref, b2_ref, o_ref):
    # In-kernel widen of the (binary) grid to bf16 — cheap VPU work hidden
    # under the input DMA; avoids a separate HBM astype pass in the wrapper.
    x = x_ref[...].astype(jnp.bfloat16)
    # fc1 + ReLU: (TB, 625) @ (625, 256) — bf16 operands, f32 accumulation.
    h = jnp.dot(x, w1_ref[...], preferred_element_type=jnp.float32)
    h = jnp.maximum(h + b1_ref[...], 0.0)
    # fc2 + ReLU: (TB, 256) @ (256, 128) — hidden re-cast to bf16 for the MXU.
    o = jnp.dot(h.astype(jnp.bfloat16), w2_ref[...],
                preferred_element_type=jnp.float32)
    o_ref[...] = jnp.maximum(o + b2_ref[...], 0.0).astype(o_ref.dtype)


@functools.partial(jax.jit, static_argnames=("tb_max", "out_dtype"))
def facegrid_forward(x, w1_bf, b1_2d, w2_bf, b2_2d, *, tb_max=TB_MAX,
                     out_dtype=jnp.float32):
    """x: (N, 1, 25, 25) or (N, 625), any dtype (int8/f32/bf16 all exact for a
    {0,1} grid).  Weights/biases come from prepare_params().  Returns
    (N, 128) in out_dtype."""
    n = x.shape[0]
    x2d = x.reshape(n, IN_FEAT)              # x.view(x.size(0), -1); no astype

    tb = _pick_batch_tile(n, tb_max)
    grid = (pl.cdiv(n, tb),)                 # partial edge block: Pallas masks
                                             # the OOB output rows, no pad/slice

    return pl.pallas_call(
        facegrid_kernel,
        out_shape=jax.ShapeDtypeStruct((n, OUT), out_dtype),
        grid_spec=pltpu.PrefetchScalarGridSpec(
            num_scalar_prefetch=0,
            grid=grid,
            in_specs=[
                # Full 625-wide feature block (== array dim): legal, Mosaic
                # pads the unaligned K internally — no HBM padding copy.
                pl.BlockSpec((tb, IN_FEAT), lambda i: (i, 0)),
                # Constant index_maps -> weights/biases DMA'd once, VMEM-
                # resident across the whole batch grid axis.
                pl.BlockSpec((IN_FEAT, HID), lambda i: (0, 0)),
                pl.BlockSpec((1, HID), lambda i: (0, 0)),
                pl.BlockSpec((HID, OUT), lambda i: (0, 0)),
                pl.BlockSpec((1, OUT), lambda i: (0, 0)),
            ],
            out_specs=pl.BlockSpec((tb, OUT), lambda i: (i, 0)),
        ),
        compiler_params=pltpu.CompilerParams(
            dimension_semantics=("parallel",)),
    )(x2d, w1_bf, b1_2d, w2_bf, b2_2d)


def prepare_params(w1, b1, w2, b2):
    """One-time conversion OUTSIDE the jitted forward: bf16 weights (native
    MXU datapath, half the HBM bytes), f32 row-vector biases."""
    return (w1.astype(jnp.bfloat16),
            b1.reshape(1, HID).astype(jnp.float32),
            w2.astype(jnp.bfloat16),
            b2.reshape(1, OUT).astype(jnp.float32))


def init_params(key):
    """Deterministic parameter init (PyTorch-like uniform fan-in bounds)."""
    k1, k2, k3, k4 = jax.random.split(key, 4)
    bound1 = 1.0 / jnp.sqrt(IN_FEAT)
    bound2 = 1.0 / jnp.sqrt(HID)
    # Stored as (in_features, out_features) — transpose of nn.Linear.weight.
    w1 = jax.random.uniform(k1, (IN_FEAT, HID), jnp.float32, -bound1, bound1)
    b1 = jax.random.uniform(k2, (HID,), jnp.float32, -bound1, bound1)
    w2 = jax.random.uniform(k3, (HID, OUT), jnp.float32, -bound2, bound2)
    b2 = jax.random.uniform(k4, (OUT,), jnp.float32, -bound2, bound2)
    return w1, b1, w2, b2


def reference_forward_f32(x, w1, b1, w2, b2):
    x2d = x.reshape(x.shape[0], -1).astype(jnp.float32)
    h = jnp.maximum(x2d @ w1 + b1, 0.0)
    return jnp.maximum(h @ w2 + b2, 0.0)


def reference_forward_bf16(x, w1, b1, w2, b2):
    """Same bf16-operand / f32-accumulate recipe as the kernel (tight check)."""
    x2d = x.reshape(x.shape[0], -1).astype(jnp.bfloat16)
    h = jnp.dot(x2d, w1.astype(jnp.bfloat16),
                preferred_element_type=jnp.float32)
    h = jnp.maximum(h + b1, 0.0)
    o = jnp.dot(h.astype(jnp.bfloat16), w2.astype(jnp.bfloat16),
                preferred_element_type=jnp.float32)
    return jnp.maximum(o + b2, 0.0)


if __name__ == "__main__":
    key = jax.random.PRNGKey(0)
    kx, kp = jax.random.split(key)

    w1, b1, w2, b2 = init_params(kp)
    params = prepare_params(w1, b1, w2, b2)

    # Face-grid input: {0,1} occupancy mask, NCHW (N, 1, 25, 25), stored int8
    # at the source (lossless) so the kernel's dominant HBM stream is 4x
    # smaller than f32.
    batch = 2
    x = (jax.random.uniform(kx, (batch, 1, GRID_SIZE, GRID_SIZE)) > 0.5
         ).astype(jnp.int8)

    out = jax.block_until_ready(facegrid_forward(x, *params))

    ref_bf = reference_forward_bf16(x, w1, b1, w2, b2)
    ref_f32 = reference_forward_f32(x, w1, b1, w2, b2)

    assert out.shape == (batch, OUT), out.shape
    # Tight check against a reference using the same bf16-in / f32-accumulate
    # recipe as the kernel.
    assert jnp.allclose(out, ref_bf, atol=2e-3, rtol=2e-3), (
        float(jnp.max(jnp.abs(out - ref_bf))))
    # Loose sanity check against the pure-f32 PyTorch-equivalent reference.
    assert jnp.allclose(out, ref_f32, atol=5e-2, rtol=5e-2), (
        float(jnp.max(jnp.abs(out - ref_f32))))

    # Secondary check: non-divisible batch exercises the multi-step grid and
    # the masked partial edge block (no pad / no output slice in the wrapper).
    batch2 = 100
    x2 = (jax.random.uniform(jax.random.PRNGKey(1),
                             (batch2, 1, GRID_SIZE, GRID_SIZE)) > 0.5
          ).astype(jnp.int8)
    out2 = jax.block_until_ready(facegrid_forward(x2, *params))
    ref2 = reference_forward_bf16(x2, w1, b1, w2, b2)
    assert out2.shape == (batch2, OUT), out2.shape
    assert jnp.allclose(out2, ref2, atol=2e-3, rtol=2e-3), (
        float(jnp.max(jnp.abs(out2 - ref2))))

    print("KERNEL_OK")
</pallas_src>

<mosaic_0001>
module attributes {stable_mosaic.version = 11 : i64} {
  func.func @facegrid_kernel(%arg0: i32, %arg1: memref<32x625xi8, #tpu.memory_space<vmem>>, %arg2: memref<625x256xbf16, #tpu.memory_space<vmem>>, %arg3: memref<1x256xf32, #tpu.memory_space<vmem>>, %arg4: memref<256x128xbf16, #tpu.memory_space<vmem>>, %arg5: memref<1x128xf32, #tpu.memory_space<vmem>>, %arg6: memref<32x128xf32, #tpu.memory_space<vmem>>) attributes {dimension_semantics = [#tpu.dimension_semantics<parallel>], iteration_bounds = array<i64: 1>, scalar_prefetch = 0 : i64, scratch_operands = 0 : i64, tpu.core_type = #tpu.core_type<tc>, window_params = [{transform_indices = @transform_0, window_bounds = array<i64: 32, 625>}, {pipeline_mode = #tpu.pipeline_mode<synchronous>, transform_indices = @transform_1, window_bounds = array<i64: 625, 256>}, {pipeline_mode = #tpu.pipeline_mode<synchronous>, transform_indices = @transform_2, window_bounds = array<i64: 1, 256>}, {pipeline_mode = #tpu.pipeline_mode<synchronous>, transform_indices = @transform_3, window_bounds = array<i64: 256, 128>}, {pipeline_mode = #tpu.pipeline_mode<synchronous>, transform_indices = @transform_4, window_bounds = array<i64: 1, 128>}, {transform_indices = @transform_5, window_bounds = array<i64: 32, 128>}]} {
    %c0 = arith.constant 0 : index
    %c0_0 = arith.constant 0 : index
    %0 = vector.load %arg1[%c0, %c0_0] : memref<32x625xi8, #tpu.memory_space<vmem>>, vector<32x625xi8>
    %1 = arith.sitofp %0 : vector<32x625xi8> to vector<32x625xbf16>
    %c0_1 = arith.constant 0 : index
    %c0_2 = arith.constant 0 : index
    %2 = vector.load %arg2[%c0_1, %c0_2] : memref<625x256xbf16, #tpu.memory_space<vmem>>, vector<625x256xbf16>
    %cst = arith.constant dense<0.000000e+00> : vector<32x256xf32>
    %3 = tpu.matmul %1, %2, %cst {dimension_numbers = #tpu.dot_dimension_numbers<[1], [0], [0], [1], [0, 0, 1, 1], [], []>} : vector<32x625xbf16>, vector<625x256xbf16>, vector<32x256xf32> -> vector<32x256xf32>
    %c0_3 = arith.constant 0 : index
    %c0_4 = arith.constant 0 : index
    %4 = vector.load %arg3[%c0_3, %c0_4] : memref<1x256xf32, #tpu.memory_space<vmem>>, vector<1x256xf32>
    %5 = vector.broadcast %4 : vector<1x256xf32> to vector<32x256xf32>
    %6 = arith.addf %3, %5 : vector<32x256xf32>
    %cst_5 = arith.constant 0.000000e+00 : f32
    %7 = vector.broadcast %cst_5 : f32 to vector<32x256xf32>
    %8 = arith.maximumf %6, %7 : vector<32x256xf32>
    %9 = arith.truncf %8 : vector<32x256xf32> to vector<32x256xbf16>
    %c0_6 = arith.constant 0 : index
    %c0_7 = arith.constant 0 : index
    %10 = vector.load %arg4[%c0_6, %c0_7] : memref<256x128xbf16, #tpu.memory_space<vmem>>, vector<256x128xbf16>
    %cst_8 = arith.constant dense<0.000000e+00> : vector<32x128xf32>
    %11 = tpu.matmul %9, %10, %cst_8 {dimension_numbers = #tpu.dot_dimension_numbers<[1], [0], [0], [1], [0, 0, 1, 1], [], []>} : vector<32x256xbf16>, vector<256x128xbf16>, vector<32x128xf32> -> vector<32x128xf32>
    %c0_9 = arith.constant 0 : index
    %c0_10 = arith.constant 0 : index
    %12 = vector.load %arg5[%c0_9, %c0_10] : memref<1x128xf32, #tpu.memory_space<vmem>>, vector<1x128xf32>
    %13 = vector.broadcast %12 : vector<1x128xf32> to vector<32x128xf32>
    %14 = arith.addf %11, %13 : vector<32x128xf32>
    %cst_11 = arith.constant 0.000000e+00 : f32
    %15 = vector.broadcast %cst_11 : f32 to vector<32x128xf32>
    %16 = arith.maximumf %14, %15 : vector<32x128xf32>
    %c0_12 = arith.constant 0 : index
    %c0_13 = arith.constant 0 : index
    %17 = vector.load %arg6[%c0_12, %c0_13] : memref<32x128xf32, #tpu.memory_space<vmem>>, vector<32x128xf32>
    tpu.vector_store %arg6[%c0_12, %c0_13], %16 {strides = array<i32>} : memref<32x128xf32, #tpu.memory_space<vmem>>, vector<32x128xf32>,
    return
  }
  func.func @transform_0(%arg0: i32) -> (i32, i32) {
    %c0_i32 = arith.constant 0 : i32
    %c0_i32_0 = arith.constant 0 : i32
    return %arg0, %c0_i32 : i32, i32
  }
  func.func @transform_1(%arg0: i32) -> (i32, i32) {
    %c0_i32 = arith.constant 0 : i32
    %c0_i32_0 = arith.constant 0 : i32
    %c0_i32_1 = arith.constant 0 : i32
    return %c0_i32, %c0_i32_0 : i32, i32
  }
  func.func @transform_2(%arg0: i32) -> (i32, i32) {
    %c0_i32 = arith.constant 0 : i32
    %c0_i32_0 = arith.constant 0 : i32
    %c0_i32_1 = arith.constant 0 : i32
    return %c0_i32, %c0_i32_0 : i32, i32
  }
  func.func @transform_3(%arg0: i32) -> (i32, i32) {
    %c0_i32 = arith.constant 0 : i32
    %c0_i32_0 = arith.constant 0 : i32
    %c0_i32_1 = arith.constant 0 : i32
    return %c0_i32, %c0_i32_0 : i32, i32
  }
  func.func @transform_4(%arg0: i32) -> (i32, i32) {
    %c0_i32 = arith.constant 0 : i32
    %c0_i32_0 = arith.constant 0 : i32
    %c0_i32_1 = arith.constant 0 : i32
    return %c0_i32, %c0_i32_0 : i32, i32
  }
  func.func @transform_5(%arg0: i32) -> (i32, i32) {
    %c0_i32 = arith.constant 0 : i32
    %c0_i32_0 = arith.constant 0 : i32
    return %arg0, %c0_i32 : i32, i32
  }
}

</mosaic_0001>

<llo_original>
// kernel: facegrid_forward.1
$region0: #{facegrid_forward.1}
  #allocation0 [shape = 'u32[]', space=smem, size = 0x4, offset = 0x4, fixed_abs, tag = 'smem constant byte address 0x4 - core index']
  #allocation1 [shape = 'u32[144,128]{1,0:T(1,128)}', space=vmem, size = 0x12000, scoped, tag = 'internal scratch']
  %s0 = inlined_call_operand.vmem [shape: s8[2,625], index: 0, kind: input, shape index: {}]
  %s1 = inlined_call_operand.hbm [shape: bf16[625,256], index: 1, kind: input, shape index: {}]
  %s2 = inlined_call_operand.vmem [shape: f32[1,256], index: 2, kind: input, shape index: {}]
  %s3 = inlined_call_operand.hbm [shape: bf16[256,128], index: 3, kind: input, shape index: {}]
  %s4 = inlined_call_operand.vmem [shape: f32[1,128], index: 4, kind: input, shape index: {}]
  %s5 = inlined_call_operand.hbm [shape: f32[2,128], index: 5, kind: output, shape index: {}]
  %s6 = sld [smem:[#allocation0]]
  $region38: #{facegrid_forward.1} parent=0
    _
  %s8 = ssub.s32 1, %s6
  %s9 = scalar_select 0, %s8, %s6
  $region1: #{facegrid_forward.1} parent=0
    #allocation2 [shape = 'u8[323584]{0}', space=vmem, size = 0x4f000, scoped, tag = 'input window, operand 1, single buffered']
    #allocation3 [shape = 's32[1]{0}', space=sflag, size = 0x4, scoped, tag = 'scoped memory for facegrid_forward.1']
    #allocation4 [shape = 's32[1]{0}', space=sflag, size = 0x4, scoped, tag = 'scoped memory for facegrid_forward.1']
    #allocation5 [shape = 'u8[65536]{0}', space=vmem, size = 0x10000, scoped, tag = 'input window, operand 3, single buffered']
    #allocation6 [shape = 's32[1]{0}', space=sflag, size = 0x4, scoped, tag = 'scoped memory for facegrid_forward.1']
    #allocation7 [shape = 'u8[16384]{0}', space=vmem, size = 0x4000, scoped, tag = 'output window, operand 0, single buffered']
    %10 = vsyncpa [#allocation3], 0
    %11 = vsyncpa [#allocation6], 0
    %12 = vsyncpa [#allocation4], 0
    // Predicated region
    $region2: #{facegrid_forward.1} parent=1 // pred_check
      _
    $region3: #{facegrid_forward.1} parent=1 // pred_check_branch
      %14 = sbr.rel (0) target = $region5
    $region4: #{facegrid_forward.1} parent=1 // pred_region
      _
    $region5: #{facegrid_forward.1} parent=1 // pred_fallthru
      _
    // Predicated region
    $region6: #{facegrid_forward.1} parent=1 // pred_check
      _
    $region7: #{facegrid_forward.1} parent=1 // pred_check_branch
      %16 = sbr.rel (0) target = $region9
    $region8: #{facegrid_forward.1} parent=1 // pred_region
      %s18 = ssub.s32 10112, 10112
      %19 = vsyncadd [#allocation3], %s18
      %s20 = sshll.u32 [#allocation2], 4
      %s21 = int_to_ptr.vmem [resolvable:$true] %s20
      %26 = dma.hbm_to_vmem [thread:$0]  %s1, 10112, %s21, [#allocation3], 128, 128, 8
    $region9: #{facegrid_forward.1} parent=1 // pred_fallthru
      _
    // Predicated region
    $region10: #{facegrid_forward.1} parent=1 // pred_check
      _
    $region11: #{facegrid_forward.1} parent=1 // pred_check_branch
      %28 = sbr.rel (0) target = $region13
    $region12: #{facegrid_forward.1} parent=1 // pred_region
      _
    $region13: #{facegrid_forward.1} parent=1 // pred_fallthru
      _
    // Predicated region
    $region14: #{facegrid_forward.1} parent=1 // pred_check
      _
    $region15: #{facegrid_forward.1} parent=1 // pred_check_branch
      %30 = sbr.rel (0) target = $region17
    $region16: #{facegrid_forward.1} parent=1 // pred_region
      %s32 = ssub.s32 2048, 2048
      %33 = vsyncadd [#allocation6], %s32
      %s34 = sshll.u32 [#allocation5], 4
      %s35 = int_to_ptr.vmem [resolvable:$true] %s34
      %40 = dma.hbm_to_vmem [thread:$0]  %s3, 2048, %s35, [#allocation6], 64, 64, 4
    $region17: #{facegrid_forward.1} parent=1 // pred_fallthru
      _
    // Predicated region
    $region18: #{facegrid_forward.1} parent=1 // pred_check
      _
    $region19: #{facegrid_forward.1} parent=1 // pred_check_branch
      %42 = sbr.rel (0) target = $region21
    $region20: #{facegrid_forward.1} parent=1 // pred_region
      _
    $region21: #{facegrid_forward.1} parent=1 // pred_fallthru
      _
    // Predicated region
    $region22: #{facegrid_forward.1} parent=1 // pred_check
      _
    $region23: #{facegrid_forward.1} parent=1 // pred_check_branch
      %44 = sbr.rel (0) target = $region25
    $region24: #{facegrid_forward.1} parent=1 // pred_region
      %45 = dma.done [#allocation3], 10112
    $region25: #{facegrid_forward.1} parent=1 // pred_fallthru
      _
    // Predicated region
    $region26: #{facegrid_forward.1} parent=1 // pred_check
      _
    $region27: #{facegrid_forward.1} parent=1 // pred_check_branch
      %47 = sbr.rel (0) target = $region29
    $region28: #{facegrid_forward.1} parent=1 // pred_region
      %48 = dma.done [#allocation6], 2048
    $region29: #{facegrid_forward.1} parent=1 // pred_fallthru
      _
    %v50 = vld [vmem:[%s0] sm:$0x1f]
    %v51 = vld [vmem:[%s0 + $0x5] sm:$0x1f]
    %v52 = vld [vmem:[%s0 + $0xa] sm:$0x1f]
    %v53 = vld [vmem:[%s0 + $0xf] sm:$0x1f]
    %v54 = vld [vmem:[%s0 + $0x14] sm:$0x1f]
    %v55 = vld [vmem:[%s0 + $0x19] sm:$0x1f]
    %v56 = vld [vmem:[%s0 + $0x1e] sm:$0x1f]
    %v57 = vld [vmem:[%s0 + $0x23] sm:$0x1f]
    %v58 = vcombine.low %v50, %v51
    %v59 = vcombine.high %v50, %v51
    %v61 = vunpack.c.l.s4 1935823168
    %v62 = vunpack.c.0.s8 %v61
    %v63 = vlaneseq
    %v64 = vshrl.u32 %v63, 7
    %v65 = vsub.s32 %v62, %v64
    %v66 = vrot.slane %v58, %v65
    %v68 = vunpack.c.l.s4 1935823168
    %v69 = vunpack.c.0.s8 %v68
    %v70 = vlaneseq
    %v71 = vshrl.u32 %v70, 7
    %v72 = vsub.s32 %v69, %v71
    %v73 = vrot.slane %v59, %v72
    %v74 = vcombine.low %v52, %v53
    %v75 = vcombine.high %v52, %v53
    %v77 = vunpack.c.l.s4 1935823168
    %v78 = vunpack.c.0.s8 %v77
    %v79 = vlaneseq
    %v80 = vshrl.u32 %v79, 7
    %v81 = vsub.s32 %v78, %v80
    %v82 = vrot.slane %v74, %v81
    %v84 = vunpack.c.l.s4 1935823168
    %v85 = vunpack.c.0.s8 %v84
    %v86 = vlaneseq
    %v87 = vshrl.u32 %v86, 7
    %v88 = vsub.s32 %v85, %v87
    %v89 = vrot.slane %v75, %v88
    %v90 = vcombine.low %v54, %v55
    %v91 = vcombine.high %v54, %v55
    %v93 = vunpack.c.l.s4 1935823168
    %v94 = vunpack.c.0.s8 %v93
    %v95 = vlaneseq
    %v96 = vshrl.u32 %v95, 7
    %v97 = vsub.s32 %v94, %v96
    %v98 = vrot.slane %v90, %v97
    %v100 = vunpack.c.l.s4 1935823168
    %v101 = vunpack.c.0.s8 %v100
    %v102 = vlaneseq
    %v103 = vshrl.u32 %v102, 7
    %v104 = vsub.s32 %v101, %v103
    %v105 = vrot.slane %v91, %v104
    %v106 = vcombine.low %v56, %v57
    %v107 = vcombine.high %v56, %v57
    %v109 = vunpack.c.l.s4 1935823168
    %v110 = vunpack.c.0.s8 %v109
    %v111 = vlaneseq
    %v112 = vshrl.u32 %v111, 7
    %v113 = vsub.s32 %v110, %v112
    %v114 = vrot.slane %v106, %v113
    %v116 = vunpack.c.l.s4 1935823168
    %v117 = vunpack.c.0.s8 %v116
    %v118 = vlaneseq
    %v119 = vshrl.u32 %v118, 7
    %v120 = vsub.s32 %v117, %v119
    %v121 = vrot.slane %v107, %v120
    %v122 = vunpack.c.l.s8.bf16 %v66
    %v123 = vunpack.c.h.s8.bf16 %v66
    %v124 = vunpack.c.l.s8.bf16 %v73
    %v125 = vunpack.c.l.s8.bf16 %v82
    %v126 = vunpack.c.h.s8.bf16 %v82
    %v127 = vunpack.c.l.s8.bf16 %v89
    %v128 = vunpack.c.l.s8.bf16 %v98
    %v129 = vunpack.c.h.s8.bf16 %v98
    %v130 = vunpack.c.l.s8.bf16 %v105
    %v131 = vunpack.c.l.s8.bf16 %v114
    %v132 = vunpack.c.h.s8.bf16 %v114
    %v133 = vunpack.c.l.s8.bf16 %v121
    %v134 = vld [vmem:[#allocation2] sm:$0xff]
    %v135 = vld [vmem:[#allocation2 + $0x8] sm:$0xff]
    %v136 = vld [vmem:[#allocation2 + $0x10] sm:$0xff]
    %v137 = vld [vmem:[#allocation2 + $0x18] sm:$0xff]
    %v138 = vld [vmem:[#allocation2 + $0x20] sm:$0xff]
    %v139 = vld [vmem:[#allocation2 + $0x28] sm:$0xff]
    %v140 = vld [vmem:[#allocation2 + $0x30] sm:$0xff]
    %v141 = vld [vmem:[#allocation2 + $0x38] sm:$0xff]
    %v142 = vld [vmem:[#allocation2 + $0x40] sm:$0xff]
    %v143 = vld [vmem:[#allocation2 + $0x48] sm:$0xff]
    %v144 = vld [vmem:[#allocation2 + $0x50] sm:$0xff]
    %v145 = vld [vmem:[#allocation2 + $0x58] sm:$0xff]
    %v146 = vld [vmem:[#allocation2 + $0x60] sm:$0xff]
    %v147 = vld [vmem:[#allocation2 + $0x68] sm:$0xff]
    %v148 = vld [vmem:[#allocation2 + $0x70] sm:$0xff]
    %v149 = vld [vmem:[#allocation2 + $0x78] sm:$0xff]
    %v150 = vld [vmem:[#allocation2 + $0x80] sm:$0xff]
    %v151 = vld [vmem:[#allocation2 + $0x88] sm:$0xff]
    %v152 = vld [vmem:[#allocation2 + $0x90] sm:$0xff]
    %v153 = vld [vmem:[#allocation2 + $0x98] sm:$0xff]
    %v154 = vld [vmem:[#allocation2 + $0xa0] sm:$0xff]
    %v155 = vld [vmem:[#allocation2 + $0xa8] sm:$0xff]
    %v156 = vld [vmem:[#allocation2 + $0xb0] sm:$0xff]
    %v157 = vld [vmem:[#allocation2 + $0xb8] sm:$0xff]
    %v158 = vld [vmem:[#allocation2 + $0xc0] sm:$0xff]
    %v159 = vld [vmem:[#allocation2 + $0xc8] sm:$0xff]
    %v160 = vld [vmem:[#allocation2 + $0xd0] sm:$0xff]
    %v161 = vld [vmem:[#allocation2 + $0xd8] sm:$0xff]
    %v162 = vld [vmem:[#allocation2 + $0xe0] sm:$0xff]
    %v163 = vld [vmem:[#allocation2 + $0xe8] sm:$0xff]
    %v164 = vld [vmem:[#allocation2 + $0xf0] sm:$0xff]
    %v165 = vld [vmem:[#allocation2 + $0xf8] sm:$0xff]
    %v166 = vld [vmem:[#allocation2 + $0x100] sm:$0xff]
    %v167 = vld [vmem:[#allocation2 + $0x108] sm:$0xff]
    %v168 = vld [vmem:[#allocation2 + $0x110] sm:$0xff]
    %v169 = vld [vmem:[#allocation2 + $0x118] sm:$0xff]
    %v170 = vld [vmem:[#allocation2 + $0x120] sm:$0xff]
    %v171 = vld [vmem:[#allocation2 + $0x128] sm:$0xff]
    %v172 = vld [vmem:[#allocation2 + $0x130] sm:$0xff]
    %v173 = vld [vmem:[#allocation2 + $0x138] sm:$0xff]
    %v174 = vld [vmem:[#allocation2 + $0x140] sm:$0xff]
    %v175 = vld [vmem:[#allocation2 + $0x148] sm:$0xff]
    %v176 = vld [vmem:[#allocation2 + $0x150] sm:$0xff]
    %v177 = vld [vmem:[#allocation2 + $0x158] sm:$0xff]
    %v178 = vld [vmem:[#allocation2 + $0x160] sm:$0xff]
    %v179 = vld [vmem:[#allocation2 + $0x168] sm:$0xff]
    %v180 = vld [vmem:[#allocation2 + $0x170] sm:$0xff]
    %v181 = vld [vmem:[#allocation2 + $0x178] sm:$0xff]
    %v182 = vld [vmem:[#allocation2 + $0x180] sm:$0xff]
    %v183 = vld [vmem:[#allocation2 + $0x188] sm:$0xff]
    %v184 = vld [vmem:[#allocation2 + $0x190] sm:$0xff]
    %v185 = vld [vmem:[#allocation2 + $0x198] sm:$0xff]
    %v186 = vld [vmem:[#allocation2 + $0x1a0] sm:$0xff]
    %v187 = vld [vmem:[#allocation2 + $0x1a8] sm:$0xff]
    %v188 = vld [vmem:[#allocation2 + $0x1b0] sm:$0xff]
    %v189 = vld [vmem:[#allocation2 + $0x1b8] sm:$0xff]
    %v190 = vld [vmem:[#allocation2 + $0x1c0] sm:$0xff]
    %v191 = vld [vmem:[#allocation2 + $0x1c8] sm:$0xff]
    %v192 = vld [vmem:[#allocation2 + $0x1d0] sm:$0xff]
    %v193 = vld [vmem:[#allocation2 + $0x1d8] sm:$0xff]
    %v194 = vld [vmem:[#allocation2 + $0x1e0] sm:$0xff]
    %v195 = vld [vmem:[#allocation2 + $0x1e8] sm:$0xff]
    %v196 = vld [vmem:[#allocation2 + $0x1f0] sm:$0xff]
    %v197 = vld [vmem:[#allocation2 + $0x1f8] sm:$0xff]
    %v198 = vld [vmem:[#allocation2 + $0x200] sm:$0xff]
    %v199 = vld [vmem:[#allocation2 + $0x208] sm:$0xff]
    %v200 = vld [vmem:[#allocation2 + $0x210] sm:$0xff]
    %v201 = vld [vmem:[#allocation2 + $0x218] sm:$0xff]
    %v202 = vld [vmem:[#allocation2 + $0x220] sm:$0xff]
    %v203 = vld [vmem:[#allocation2 + $0x228] sm:$0xff]
    %v204 = vld [vmem:[#allocation2 + $0x230] sm:$0xff]
    %v205 = vld [vmem:[#allocation2 + $0x238] sm:$0xff]
    %v206 = vld [vmem:[#allocation2 + $0x240] sm:$0xff]
    %v207 = vld [vmem:[#allocation2 + $0x248] sm:$0xff]
    %v208 = vld [vmem:[#allocation2 + $0x250] sm:$0xff]
    %v209 = vld [vmem:[#allocation2 + $0x258] sm:$0xff]
    %v210 = vld [vmem:[#allocation2 + $0x260] sm:$0xff]
    %v211 = vld [vmem:[#allocation2 + $0x268] sm:$0xff]
    %v212 = vld [vmem:[#allocation2 + $0x270] sm:$0x11]
    %v213 = vld [vmem:[%s2] sm:$0x3]
    %v215 = vlaneseq
    %v216 = vshrl.u32 %v215, 7
    %v217 = vsub.s32 0, %v216
    %v218 = vrot.slane %v213, %v217
    %v219 = vlaneseq
    %v220 = vshrl.u32 %v219, 7
    %v221 = vsub.s32 1, %v220
    %v222 = vrot.slane %v213, %v221
    %v237 = vunpack.c.l.b16 %v122
    %v238 = vunpack.c.h.b16 %v122
    %v239 = vunpack.c.l.b16 %v123
    %v240 = vunpack.c.h.b16 %v123
    %v241 = vunpack.c.l.b16 %v124
    %v242 = vunpack.c.l.b16 %v125
    %v243 = vunpack.c.h.b16 %v125
    %v244 = vunpack.c.l.b16 %v126
    %v245 = vunpack.c.h.b16 %v126
    %v246 = vunpack.c.l.b16 %v127
    %v247 = vunpack.c.l.b16 %v128
    %v248 = vunpack.c.h.b16 %v128
    %v249 = vunpack.c.l.b16 %v129
    %v250 = vunpack.c.h.b16 %v129
    %v251 = vunpack.c.l.b16 %v130
    %v252 = vunpack.c.l.b16 %v131
    %v253 = vunpack.c.h.b16 %v131
    %v254 = vunpack.c.l.b16 %v132
    %v255 = vunpack.c.h.b16 %v132
    %v256 = vunpack.c.l.b16 %v133
    %v257 = vpack.c.b16 %v242, %v237
    %v258 = vpack.c.b16 %v243, %v238
    %v259 = vpack.c.b16 %v244, %v239
    %v260 = vpack.c.b16 %v245, %v240
    %v261 = vpack.c.b16 %v246, %v241
    %v262 = vpack.c.b16 %v252, %v247
    %v263 = vpack.c.b16 %v253, %v248
    %v264 = vpack.c.b16 %v254, %v249
    %v265 = vpack.c.b16 %v255, %v250
    %v266 = vpack.c.b16 %v256, %v251
    %v354 = vunpack.c.l.b16 %v134
    %v355 = vunpack.c.h.b16 %v134
    %v356 = vunpack.c.l.b16 %v135
    %v357 = vunpack.c.h.b16 %v135
    %v358 = vunpack.c.l.b16 %v136
    %v359 = vunpack.c.h.b16 %v136
    %v360 = vunpack.c.l.b16 %v137
    %v361 = vunpack.c.h.b16 %v137
    %v362 = vunpack.c.l.b16 %v138
    %v363 = vunpack.c.h.b16 %v138
    %v364 = vunpack.c.l.b16 %v139
    %v365 = vunpack.c.h.b16 %v139
    %v366 = vunpack.c.l.b16 %v140
    %v367 = vunpack.c.h.b16 %v140
    %v368 = vunpack.c.l.b16 %v141
    %v369 = vunpack.c.h.b16 %v141
    %v370 = vunpack.c.l.b16 %v142
    %v371 = vunpack.c.h.b16 %v142
    %v372 = vunpack.c.l.b16 %v143
    %v373 = vunpack.c.h.b16 %v143
    %v374 = vunpack.c.l.b16 %v144
    %v375 = vunpack.c.h.b16 %v144
    %v376 = vunpack.c.l.b16 %v145
    %v377 = vunpack.c.h.b16 %v145
    %v378 = vunpack.c.l.b16 %v146
    %v379 = vunpack.c.h.b16 %v146
    %v380 = vunpack.c.l.b16 %v147
    %v381 = vunpack.c.h.b16 %v147
    %v382 = vunpack.c.l.b16 %v148
    %v383 = vunpack.c.h.b16 %v148
    %v384 = vunpack.c.l.b16 %v149
    %v385 = vunpack.c.h.b16 %v149
    %v386 = vunpack.c.l.b16 %v150
    %v387 = vunpack.c.h.b16 %v150
    %v388 = vunpack.c.l.b16 %v151
    %v389 = vunpack.c.h.b16 %v151
    %v390 = vunpack.c.l.b16 %v152
    %v391 = vunpack.c.h.b16 %v152
    %v392 = vunpack.c.l.b16 %v153
    %v393 = vunpack.c.h.b16 %v153
    %v394 = vunpack.c.l.b16 %v154
    %v395 = vunpack.c.h.b16 %v154
    %v396 = vunpack.c.l.b16 %v155
    %v397 = vunpack.c.h.b16 %v155
    %v398 = vunpack.c.l.b16 %v156
    %v399 = vunpack.c.h.b16 %v156
    %v400 = vunpack.c.l.b16 %v157
    %v401 = vunpack.c.h.b16 %v157
    %v402 = vunpack.c.l.b16 %v158
    %v403 = vunpack.c.h.b16 %v158
    %v404 = vunpack.c.l.b16 %v159
    %v405 = vunpack.c.h.b16 %v159
    %v406 = vunpack.c.l.b16 %v160
    %v407 = vunpack.c.h.b16 %v160
    %v408 = vunpack.c.l.b16 %v161
    %v409 = vunpack.c.h.b16 %v161
    %v410 = vunpack.c.l.b16 %v162
    %v411 = vunpack.c.h.b16 %v162
    %v412 = vunpack.c.l.b16 %v163
    %v413 = vunpack.c.h.b16 %v163
    %v414 = vunpack.c.l.b16 %v164
    %v415 = vunpack.c.h.b16 %v164
    %v416 = vunpack.c.l.b16 %v165
    %v417 = vunpack.c.h.b16 %v165
    %v418 = vunpack.c.l.b16 %v166
    %v419 = vunpack.c.h.b16 %v166
    %v420 = vunpack.c.l.b16 %v167
    %v421 = vunpack.c.h.b16 %v167
    %v422 = vunpack.c.l.b16 %v168
    %v423 = vunpack.c.h.b16 %v168
    %v424 = vunpack.c.l.b16 %v169
    %v425 = vunpack.c.h.b16 %v169
    %v426 = vunpack.c.l.b16 %v170
    %v427 = vunpack.c.h.b16 %v170
    %v428 = vunpack.c.l.b16 %v171
    %v429 = vunpack.c.h.b16 %v171
    %v430 = vunpack.c.l.b16 %v172
    %v431 = vunpack.c.h.b16 %v172
    %v432 = vunpack.c.l.b16 %v173
    %v433 = vunpack.c.h.b16 %v173
    %v434 = vunpack.c.l.b16 %v174
    %v435 = vunpack.c.h.b16 %v174
    %v436 = vunpack.c.l.b16 %v175
    %v437 = vunpack.c.h.b16 %v175
    %v438 = vunpack.c.l.b16 %v176
    %v439 = vunpack.c.h.b16 %v176
    %v440 = vunpack.c.l.b16 %v177
    %v441 = vunpack.c.h.b16 %v177
    %v442 = vunpack.c.l.b16 %v178
    %v443 = vunpack.c.h.b16 %v178
    %v444 = vunpack.c.l.b16 %v179
    %v445 = vunpack.c.h.b16 %v179
    %v446 = vunpack.c.l.b16 %v180
    %v447 = vunpack.c.h.b16 %v180
    %v448 = vunpack.c.l.b16 %v181
    %v449 = vunpack.c.h.b16 %v181
    %v450 = vunpack.c.l.b16 %v182
    %v451 = vunpack.c.h.b16 %v182
    %v452 = vunpack.c.l.b16 %v183
    %v453 = vunpack.c.h.b16 %v183
    %v454 = vunpack.c.l.b16 %v184
    %v455 = vunpack.c.h.b16 %v184
    %v456 = vunpack.c.l.b16 %v185
    %v457 = vunpack.c.h.b16 %v185
    %v458 = vunpack.c.l.b16 %v186
    %v459 = vunpack.c.h.b16 %v186
    %v460 = vunpack.c.l.b16 %v187
    %v461 = vunpack.c.h.b16 %v187
    %v462 = vunpack.c.l.b16 %v188
    %v463 = vunpack.c.h.b16 %v188
    %v464 = vunpack.c.l.b16 %v189
    %v465 = vunpack.c.h.b16 %v189
    %v466 = vunpack.c.l.b16 %v190
    %v467 = vunpack.c.h.b16 %v190
    %v468 = vunpack.c.l.b16 %v191
    %v469 = vunpack.c.h.b16 %v191
    %v470 = vunpack.c.l.b16 %v192
    %v471 = vunpack.c.h.b16 %v192
    %v472 = vunpack.c.l.b16 %v193
    %v473 = vunpack.c.h.b16 %v193
    %v474 = vunpack.c.l.b16 %v194
    %v475 = vunpack.c.h.b16 %v194
    %v476 = vunpack.c.l.b16 %v195
    %v477 = vunpack.c.h.b16 %v195
    %v478 = vunpack.c.l.b16 %v196
    %v479 = vunpack.c.h.b16 %v196
    %v480 = vunpack.c.l.b16 %v197
    %v481 = vunpack.c.h.b16 %v197
    %v482 = vunpack.c.l.b16 %v198
    %v483 = vunpack.c.h.b16 %v198
    %v484 = vunpack.c.l.b16 %v199
    %v485 = vunpack.c.h.b16 %v199
    %v486 = vunpack.c.l.b16 %v200
    %v487 = vunpack.c.h.b16 %v200
    %v488 = vunpack.c.l.b16 %v201
    %v489 = vunpack.c.h.b16 %v201
    %v490 = vunpack.c.l.b16 %v202
    %v491 = vunpack.c.h.b16 %v202
    %v492 = vunpack.c.l.b16 %v203
    %v493 = vunpack.c.h.b16 %v203
    %v494 = vunpack.c.l.b16 %v204
    %v495 = vunpack.c.h.b16 %v204
    %v496 = vunpack.c.l.b16 %v205
    %v497 = vunpack.c.h.b16 %v205
    %v498 = vunpack.c.l.b16 %v206
    %v499 = vunpack.c.h.b16 %v206
    %v500 = vunpack.c.l.b16 %v207
    %v501 = vunpack.c.h.b16 %v207
    %v502 = vunpack.c.l.b16 %v208
    %v503 = vunpack.c.h.b16 %v208
    %v504 = vunpack.c.l.b16 %v209
    %v505 = vunpack.c.h.b16 %v209
    %v506 = vunpack.c.l.b16 %v210
    %v507 = vunpack.c.h.b16 %v210
    %v508 = vunpack.c.l.b16 %v211
    %v509 = vunpack.c.h.b16 %v211
    %v510 = vunpack.c.l.b16 %v212
    %v511 = vunpack.c.h.b16 %v212
    %v512 = vpack.c.b16 %v356, %v354
    %v513 = vpack.c.b16 %v357, %v355
    %v514 = vpack.c.b16 %v360, %v358
    %v515 = vpack.c.b16 %v361, %v359
    %v516 = vpack.c.b16 %v364, %v362
    %v517 = vpack.c.b16 %v365, %v363
    %v518 = vpack.c.b16 %v368, %v366
    %v519 = vpack.c.b16 %v369, %v367
    %v520 = vpack.c.b16 %v372, %v370
    %v521 = vpack.c.b16 %v373, %v371
    %v522 = vpack.c.b16 %v376, %v374
    %v523 = vpack.c.b16 %v377, %v375
    %v524 = vpack.c.b16 %v380, %v378
    %v525 = vpack.c.b16 %v381, %v379
    %v526 = vpack.c.b16 %v384, %v382
    %v527 = vpack.c.b16 %v385, %v383
    %v528 = vpack.c.b16 %v388, %v386
    %v529 = vpack.c.b16 %v389, %v387
    %v530 = vpack.c.b16 %v392, %v390
    %v531 = vpack.c.b16 %v393, %v391
    %v532 = vpack.c.b16 %v396, %v394
    %v533 = vpack.c.b16 %v397, %v395
    %v534 = vpack.c.b16 %v400, %v398
    %v535 = vpack.c.b16 %v401, %v399
    %v536 = vpack.c.b16 %v404, %v402
    %v537 = vpack.c.b16 %v405, %v403
    %v538 = vpack.c.b16 %v408, %v406
    %v539 = vpack.c.b16 %v409, %v407
    %v540 = vpack.c.b16 %v412, %v410
    %v541 = vpack.c.b16 %v413, %v411
    %v542 = vpack.c.b16 %v416, %v414
    %v543 = vpack.c.b16 %v417, %v415
    %v544 = vpack.c.b16 %v420, %v418
    %v545 = vpack.c.b16 %v421, %v419
    %v546 = vpack.c.b16 %v424, %v422
    %v547 = vpack.c.b16 %v425, %v423
    %v548 = vpack.c.b16 %v428, %v426
    %v549 = vpack.c.b16 %v429, %v427
    %v550 = vpack.c.b16 %v432, %v430
    %v551 = vpack.c.b16 %v433, %v431
    %v552 = vpack.c.b16 %v436, %v434
    %v553 = vpack.c.b16 %v437, %v435
    %v554 = vpack.c.b16 %v440, %v438
    %v555 = vpack.c.b16 %v441, %v439
    %v556 = vpack.c.b16 %v444, %v442
    %v557 = vpack.c.b16 %v445, %v443
    %v558 = vpack.c.b16 %v448, %v446
    %v559 = vpack.c.b16 %v449, %v447
    %v560 = vpack.c.b16 %v452, %v450
    %v561 = vpack.c.b16 %v453, %v451
    %v562 = vpack.c.b16 %v456, %v454
    %v563 = vpack.c.b16 %v457, %v455
    %v564 = vpack.c.b16 %v460, %v458
    %v565 = vpack.c.b16 %v461, %v459
    %v566 = vpack.c.b16 %v464, %v462
    %v567 = vpack.c.b16 %v465, %v463
    %v568 = vpack.c.b16 %v468, %v466
    %v569 = vpack.c.b16 %v469, %v467
    %v570 = vpack.c.b16 %v472, %v470
    %v571 = vpack.c.b16 %v473, %v471
    %v572 = vpack.c.b16 %v476, %v474
    %v573 = vpack.c.b16 %v477, %v475
    %v574 = vpack.c.b16 %v480, %v478
    %v575 = vpack.c.b16 %v481, %v479
    %v576 = vpack.c.b16 %v484, %v482
    %v577 = vpack.c.b16 %v485, %v483
    %v578 = vpack.c.b16 %v488, %v486
    %v579 = vpack.c.b16 %v489, %v487
    %v580 = vpack.c.b16 %v492, %v490
    %v581 = vpack.c.b16 %v493, %v491
    %v582 = vpack.c.b16 %v496, %v494
    %v583 = vpack.c.b16 %v497, %v495
    %v584 = vpack.c.b16 %v500, %v498
    %v585 = vpack.c.b16 %v501, %v499
    %v586 = vpack.c.b16 %v504, %v502
    %v587 = vpack.c.b16 %v505, %v503
    %v588 = vpack.c.b16 %v508, %v506
    %v589 = vpack.c.b16 %v509, %v507
    %v590 = vpack.c.b16 %v510, %v510
    %v591 = vpack.c.b16 %v511, %v511
    %vm670 = vcmask 924672
    %v672 = vsel %vm670, %v261, 0
    %v675 = vsel %vm670, %v266, 0
    %vm677 = vcmask 1040384
    %v678 = vsel 0, 4294967295, 65535
    %v679 = vsel %vm677, %v678, 0
    %v681 = vand.u32 %v590, %v679
    %v684 = vand.u32 %v591, %v679
    %686 = vmatprep.subr.bf16.mxu0 %v513
    %687 = vmatpush1.bf16.msra.mxu0 %v512
    %688 = vmatprep.subr.bf16.mxu0 %v515
    %689 = vmatpush1.bf16.msra.mxu0 %v514
    %690 = vmatprep.subr.bf16.mxu0 %v517
    %691 = vmatpush1.bf16.msra.mxu0 %v516
    %692 = vmatprep.subr.bf16.mxu0 %v519
    %693 = vmatpush1.bf16.msra.mxu0 %v518
    %694 = vmatprep.subr.bf16.mxu0 %v521
    %695 = vmatpush1.bf16.msra.mxu0 %v520
    %696 = vmatprep.subr.bf16.mxu0 %v523
    %697 = vmatpush1.bf16.msra.mxu0 %v522
    %698 = vmatprep.subr.bf16.mxu0 %v525
    %699 = vmatpush1.bf16.msra.mxu0 %v524
    %700 = vmatprep.subr.bf16.mxu0 %v527
    %701 = vmatpush1.bf16.msra.mxu0 %v526
    %702 = vmatprep.subr.bf16.mxu0 %v529
    %703 = vmatpush1.bf16.msra.mxu0 %v528
    %704 = vmatprep.subr.bf16.mxu0 %v531
    %705 = vmatpush1.bf16.msra.mxu0 %v530
    %706 = vmatprep.subr.bf16.mxu0 %v533
    %707 = vmatpush1.bf16.msra.mxu0 %v532
    %708 = vmatprep.subr.bf16.mxu0 %v535
    %709 = vmatpush1.bf16.msra.mxu0 %v534
    %710 = vmatprep.subr.bf16.mxu0 %v537
    %711 = vmatpush1.bf16.msra.mxu0 %v536
    %712 = vmatprep.subr.bf16.mxu0 %v539
    %713 = vmatpush1.bf16.msra.mxu0 %v538
    %714 = vmatprep.subr.bf16.mxu0 %v541
    %715 = vmatpush1.bf16.msra.mxu0 %v540
    %716 = vmatprep.subr.bf16.mxu0 %v543
    %717 = vmatpush1.bf16.msra.mxu0 %v542
    %718 = vmatprep.mubr.bf16.mxu0 %v258
    %719 = vmatmul.mubr.bf16.gmra.mrb[0].mxu0 %v257
    %v720 = vpop.f32.mrb[0].mxu0
    %v721 = vadd.f32 %v218, %v720
    %v722 = vpop.f32.mrb[0].mxu0
    %v723 = vadd.f32 %v222, %v722
    %v724 = vpop.f32.mrb[0].mxu0
    %v725 = vadd.f32 %v218, %v724
    %v726 = vpop.f32.mrb[0].mxu0
    %v727 = vadd.f32 %v222, %v726
    %728 = vmatprep.mubr.bf16.mxu0 %v263
    %729 = vmatmul.mubr.bf16.gmra.mrb[0].mxu0 %v262
    %v730 = vpop.f32.mrb[0].mxu0
    %v731 = vadd.f32 %v218, %v730
    %v732 = vpop.f32.mrb[0].mxu0
    %v733 = vadd.f32 %v222, %v732
    %v734 = vpop.f32.mrb[0].mxu0
    %v735 = vadd.f32 %v218, %v734
    %v736 = vpop.f32.mrb[0].mxu0
    %v737 = vadd.f32 %v222, %v736
    %738 = vdwg.mxu0
    %739 = vmatprep.subr.bf16.mxu0 %v545
    %740 = vmatpush1.bf16.msra.mxu0 %v544
    %741 = vmatprep.subr.bf16.mxu0 %v547
    %742 = vmatpush1.bf16.msra.mxu0 %v546
    %743 = vmatprep.subr.bf16.mxu0 %v549
    %744 = vmatpush1.bf16.msra.mxu0 %v548
    %745 = vmatprep.subr.bf16.mxu0 %v551
    %746 = vmatpush1.bf16.msra.mxu0 %v550
    %747 = vmatprep.subr.bf16.mxu0 %v553
    %748 = vmatpush1.bf16.msra.mxu0 %v552
    %749 = vmatprep.subr.bf16.mxu0 %v555
    %750 = vmatpush1.bf16.msra.mxu0 %v554
    %751 = vmatprep.subr.bf16.mxu0 %v557
    %752 = vmatpush1.bf16.msra.mxu0 %v556
    %753 = vmatprep.subr.bf16.mxu0 %v559
    %754 = vmatpush1.bf16.msra.mxu0 %v558
    %755 = vmatprep.subr.bf16.mxu0 %v561
    %756 = vmatpush1.bf16.msra.mxu0 %v560
    %757 = vmatprep.subr.bf16.mxu0 %v563
    %758 = vmatpush1.bf16.msra.mxu0 %v562
    %759 = vmatprep.subr.bf16.mxu0 %v565
    %760 = vmatpush1.bf16.msra.mxu0 %v564
    %761 = vmatprep.subr.bf16.mxu0 %v567
    %762 = vmatpush1.bf16.msra.mxu0 %v566
    %763 = vmatprep.subr.bf16.mxu0 %v569
    %764 = vmatpush1.bf16.msra.mxu0 %v568
    %765 = vmatprep.subr.bf16.mxu0 %v571
    %766 = vmatpush1.bf16.msra.mxu0 %v570
    %767 = vmatprep.subr.bf16.mxu0 %v573
    %768 = vmatpush1.bf16.msra.mxu0 %v572
    %769 = vmatprep.subr.bf16.mxu0 %v575
    %770 = vmatpush1.bf16.msra.mxu0 %v574
    %771 = vmatprep.mubr.bf16.mxu0 %v260
    %772 = vmatmul.mubr.bf16.gmra.mrb[0].mxu0 %v259
    %v773 = vpop.f32.mrb[0].mxu0
    %v774 = vadd.f32 %v721, %v773
    %v775 = vpop.f32.mrb[0].mxu0
    %v776 = vadd.f32 %v723, %v775
    %v777 = vpop.f32.mrb[0].mxu0
    %v778 = vadd.f32 %v725, %v777
    %v779 = vpop.f32.mrb[0].mxu0
    %v780 = vadd.f32 %v727, %v779
    %781 = vmatprep.mubr.bf16.mxu0 %v265
    %782 = vmatmul.mubr.bf16.gmra.mrb[0].mxu0 %v264
    %v783 = vpop.f32.mrb[0].mxu0
    %v784 = vadd.f32 %v731, %v783
    %v785 = vpop.f32.mrb[0].mxu0
    %v786 = vadd.f32 %v733, %v785
    %v787 = vpop.f32.mrb[0].mxu0
    %v788 = vadd.f32 %v735, %v787
    %v789 = vpop.f32.mrb[0].mxu0
    %v790 = vadd.f32 %v737, %v789
    %791 = vdwg.mxu0
    %792 = vmatprep.subr.bf16.mxu0 %v577
    %793 = vmatpush1.bf16.msra.mxu0 %v576
    %794 = vmatprep.subr.bf16.mxu0 %v579
    %795 = vmatpush1.bf16.msra.mxu0 %v578
    %796 = vmatprep.subr.bf16.mxu0 %v581
    %797 = vmatpush1.bf16.msra.mxu0 %v580
    %798 = vmatprep.subr.bf16.mxu0 %v583
    %799 = vmatpush1.bf16.msra.mxu0 %v582
    %800 = vmatprep.subr.bf16.mxu0 %v585
    %801 = vmatpush1.bf16.msra.mxu0 %v584
    %802 = vmatprep.subr.bf16.mxu0 %v587
    %803 = vmatpush1.bf16.msra.mxu0 %v586
    %804 = vmatprep.subr.bf16.mxu0 %v589
    %805 = vmatpush1.bf16.msra.mxu0 %v588
    %806 = vmatprep.subr.bf16.mxu0 %v684
    %807 = vmatpush1.bf16.msra.mxu0 %v681
    %808 = vmatprep.subr.bf16.mxu0 0
    %809 = vmatpush1.bf16.msra.mxu0 0
    %810 = vmatprep.subr.bf16.mxu0 0
    %811 = vmatpush1.bf16.msra.mxu0 0
    %812 = vmatprep.subr.bf16.mxu0 0
    %813 = vmatpush1.bf16.msra.mxu0 0
    %814 = vmatprep.subr.bf16.mxu0 0
    %815 = vmatpush1.bf16.msra.mxu0 0
    %816 = vmatprep.subr.bf16.mxu0 0
    %817 = vmatpush1.bf16.msra.mxu0 0
    %818 = vmatprep.subr.bf16.mxu0 0
    %819 = vmatpush1.bf16.msra.mxu0 0
    %820 = vmatprep.subr.bf16.mxu0 0
    %821 = vmatpush1.bf16.msra.mxu0 0
    %822 = vmatprep.subr.bf16.mxu0 0
    %823 = vmatpush1.bf16.msra.mxu0 0
    %824 = vmatprep.mubr.bf16.mxu0 0
    %825 = vmatmul.mubr.bf16.gmra.mrb[0].mxu0 %v672
    %v826 = vpop.f32.mrb[0].mxu0
    %v827 = vadd.f32 %v774, %v826
    %v828 = vpop.f32.mrb[0].mxu0
    %v829 = vadd.f32 %v776, %v828
    %v830 = vpop.f32.mrb[0].mxu0
    %v831 = vadd.f32 %v778, %v830
    %v832 = vpop.f32.mrb[0].mxu0
    %v833 = vadd.f32 %v780, %v832
    %834 = vmatprep.mubr.bf16.mxu0 0
    %835 = vmatmul.mubr.bf16.gmra.mrb[0].mxu0 %v675
    %v836 = vpop.f32.mrb[0].mxu0
    %v837 = vadd.f32 %v784, %v836
    %v838 = vpop.f32.mrb[0].mxu0
    %v839 = vadd.f32 %v786, %v838
    %v840 = vpop.f32.mrb[0].mxu0
    %v841 = vadd.f32 %v788, %v840
    %v842 = vpop.f32.mrb[0].mxu0
    %v843 = vadd.f32 %v790, %v842
    %844 = vdwg.mxu0
    %v845 = vmax.f32 %v827, 0.0
    %v846 = vmax.f32 %v829, 0.0
    %v847 = vmax.f32 %v831, 0.0
    %v848 = vmax.f32 %v833, 0.0
    %v849 = vmax.f32 %v837, 0.0
    %v850 = vmax.f32 %v839, 0.0
    %v851 = vmax.f32 %v841, 0.0
    %v852 = vmax.f32 %v843, 0.0
    %v853 = vpack.c.bf16 %v847, %v845
    %v854 = vpack.c.bf16 %v848, %v846
    %v855 = vpack.c.bf16 %v851, %v849
    %v856 = vpack.c.bf16 %v852, %v850
    %v857 = vld [vmem:[#allocation5] sm:$0xf]
    %v858 = vld [vmem:[#allocation5 + $0x4] sm:$0xf]
    %v859 = vld [vmem:[#allocation5 + $0x8] sm:$0xf]
    %v860 = vld [vmem:[#allocation5 + $0xc] sm:$0xf]
    %v861 = vld [vmem:[#allocation5 + $0x10] sm:$0xf]
    %v862 = vld [vmem:[#allocation5 + $0x14] sm:$0xf]
    %v863 = vld [vmem:[#allocation5 + $0x18] sm:$0xf]
    %v864 = vld [vmem:[#allocation5 + $0x1c] sm:$0xf]
    %v865 = vld [vmem:[#allocation5 + $0x20] sm:$0xf]
    %v866 = vld [vmem:[#allocation5 + $0x24] sm:$0xf]
    %v867 = vld [vmem:[#allocation5 + $0x28] sm:$0xf]
    %v868 = vld [vmem:[#allocation5 + $0x2c] sm:$0xf]
    %v869 = vld [vmem:[#allocation5 + $0x30] sm:$0xf]
    %v870 = vld [vmem:[#allocation5 + $0x34] sm:$0xf]
    %v871 = vld [vmem:[#allocation5 + $0x38] sm:$0xf]
    %v872 = vld [vmem:[#allocation5 + $0x3c] sm:$0xf]
    %v873 = vld [vmem:[#allocation5 + $0x40] sm:$0xf]
    %v874 = vld [vmem:[#allocation5 + $0x44] sm:$0xf]
    %v875 = vld [vmem:[#allocation5 + $0x48] sm:$0xf]
    %v876 = vld [vmem:[#allocation5 + $0x4c] sm:$0xf]
    %v877 = vld [vmem:[#allocation5 + $0x50] sm:$0xf]
    %v878 = vld [vmem:[#allocation5 + $0x54] sm:$0xf]
    %v879 = vld [vmem:[#allocation5 + $0x58] sm:$0xf]
    %v880 = vld [vmem:[#allocation5 + $0x5c] sm:$0xf]
    %v881 = vld [vmem:[#allocation5 + $0x60] sm:$0xf]
    %v882 = vld [vmem:[#allocation5 + $0x64] sm:$0xf]
    %v883 = vld [vmem:[#allocation5 + $0x68] sm:$0xf]
    %v884 = vld [vmem:[#allocation5 + $0x6c] sm:$0xf]
    %v885 = vld [vmem:[#allocation5 + $0x70] sm:$0xf]
    %v886 = vld [vmem:[#allocation5 + $0x74] sm:$0xf]
    %v887 = vld [vmem:[#allocation5 + $0x78] sm:$0xf]
    %v888 = vld [vmem:[#allocation5 + $0x7c] sm:$0xf]
    %v889 = vld [vmem:[%s4] sm:$0x1]
    %v891 = vlaneseq
    %v892 = vshrl.u32 %v891, 7
    %v893 = vsub.s32 0, %v892
    %v894 = vrot.slane %v889, %v893
    %v928 = vunpack.c.l.b16 %v857
    %v929 = vunpack.c.l.b16 %v858
    %v930 = vunpack.c.l.b16 %v859
    %v931 = vunpack.c.l.b16 %v860
    %v932 = vunpack.c.l.b16 %v861
    %v933 = vunpack.c.l.b16 %v862
    %v934 = vunpack.c.l.b16 %v863
    %v935 = vunpack.c.l.b16 %v864
    %v936 = vunpack.c.l.b16 %v865
    %v937 = vunpack.c.l.b16 %v866
    %v938 = vunpack.c.l.b16 %v867
    %v939 = vunpack.c.l.b16 %v868
    %v940 = vunpack.c.l.b16 %v869
    %v941 = vunpack.c.l.b16 %v870
    %v942 = vunpack.c.l.b16 %v871
    %v943 = vunpack.c.l.b16 %v872
    %v944 = vunpack.c.l.b16 %v873
    %v945 = vunpack.c.l.b16 %v874
    %v946 = vunpack.c.l.b16 %v875
    %v947 = vunpack.c.l.b16 %v876
    %v948 = vunpack.c.l.b16 %v877
    %v949 = vunpack.c.l.b16 %v878
    %v950 = vunpack.c.l.b16 %v879
    %v951 = vunpack.c.l.b16 %v880
    %v952 = vunpack.c.l.b16 %v881
    %v953 = vunpack.c.l.b16 %v882
    %v954 = vunpack.c.l.b16 %v883
    %v955 = vunpack.c.l.b16 %v884
    %v956 = vunpack.c.l.b16 %v885
    %v957 = vunpack.c.l.b16 %v886
    %v958 = vunpack.c.l.b16 %v887
    %v959 = vunpack.c.l.b16 %v888
    %v960 = vpack.c.b16 %v929, %v928
    %v961 = vpack.c.b16 %v931, %v930
    %v962 = vpack.c.b16 %v933, %v932
    %v963 = vpack.c.b16 %v935, %v934
    %v964 = vpack.c.b16 %v937, %v936
    %v965 = vpack.c.b16 %v939, %v938
    %v966 = vpack.c.b16 %v941, %v940
    %v967 = vpack.c.b16 %v943, %v942
    %v968 = vpack.c.b16 %v945, %v944
    %v969 = vpack.c.b16 %v947, %v946
    %v970 = vpack.c.b16 %v949, %v948
    %v971 = vpack.c.b16 %v951, %v950
    %v972 = vpack.c.b16 %v953, %v952
    %v973 = vpack.c.b16 %v955, %v954
    %v974 = vpack.c.b16 %v957, %v956
    %v975 = vpack.c.b16 %v959, %v958
    %992 = vmatprep.subr.bf16.mxu0 0
    %993 = vmatpush1.bf16.msra.mxu0 %v960
    %994 = vmatprep.subr.bf16.mxu0 0
    %995 = vmatpush1.bf16.msra.mxu0 %v961
    %996 = vmatprep.subr.bf16.mxu0 0
    %997 = vmatpush1.bf16.msra.mxu0 %v962
    %998 = vmatprep.subr.bf16.mxu0 0
    %999 = vmatpush1.bf16.msra.mxu0 %v963
    %1000 = vmatprep.subr.bf16.mxu0 0
    %1001 = vmatpush1.bf16.msra.mxu0 %v964
    %1002 = vmatprep.subr.bf16.mxu0 0
    %1003 = vmatpush1.bf16.msra.mxu0 %v965
    %1004 = vmatprep.subr.bf16.mxu0 0
    %1005 = vmatpush1.bf16.msra.mxu0 %v966
    %1006 = vmatprep.subr.bf16.mxu0 0
    %1007 = vmatpush1.bf16.msra.mxu0 %v967
    %1008 = vmatprep.subr.bf16.mxu0 0
    %1009 = vmatpush1.bf16.msra.mxu0 %v968
    %1010 = vmatprep.subr.bf16.mxu0 0
    %1011 = vmatpush1.bf16.msra.mxu0 %v969
    %1012 = vmatprep.subr.bf16.mxu0 0
    %1013 = vmatpush1.bf16.msra.mxu0 %v970
    %1014 = vmatprep.subr.bf16.mxu0 0
    %1015 = vmatpush1.bf16.msra.mxu0 %v971
    %1016 = vmatprep.subr.bf16.mxu0 0
    %1017 = vmatpush1.bf16.msra.mxu0 %v972
    %1018 = vmatprep.subr.bf16.mxu0 0
    %1019 = vmatpush1.bf16.msra.mxu0 %v973
    %1020 = vmatprep.subr.bf16.mxu0 0
    %1021 = vmatpush1.bf16.msra.mxu0 %v974
    %1022 = vmatprep.subr.bf16.mxu0 0
    %1023 = vmatpush1.bf16.msra.mxu0 %v975
    %1024 = vmatprep.mubr.bf16.mxu0 %v854
    %1025 = vmatmul.mubr.bf16.gmra.mrb[0].mxu0 %v853
    %v1026 = vpop.f32.mrb[0].mxu0
    %v1027 = vadd.f32 %v894, %v1026
    %v1028 = vpop.f32.mrb[0].mxu0
    %v1029 = vpop.f32.mrb[0].mxu0
    %v1030 = vadd.f32 %v894, %v1029
    %v1031 = vpop.f32.mrb[0].mxu0
    %1032 = vmatprep.mubr.bf16.mxu0 %v856
    %1033 = vmatmul.mubr.bf16.gmra.mrb[0].mxu0 %v855
    %v1034 = vpop.f32.mrb[0].mxu0
    %v1035 = vadd.f32 %v894, %v1034
    %v1036 = vpop.f32.mrb[0].mxu0
    %v1037 = vpop.f32.mrb[0].mxu0
    %v1038 = vadd.f32 %v894, %v1037
    %v1039 = vpop.f32.mrb[0].mxu0
    %1040 = vdwg.mxu0
    %v1041 = vmax.f32 %v1027, 0.0
    %v1042 = vmax.f32 %v1030, 0.0
    %v1043 = vmax.f32 %v1035, 0.0
    %v1044 = vmax.f32 %v1038, 0.0
    %1045 = vst [vmem:[#allocation7] sm:$0xff] %v1041
    %1046 = vst [vmem:[#allocation7 + $0x8] sm:$0xff] %v1042
    %1047 = vst [vmem:[#allocation7 + $0x10] sm:$0xff] %v1043
    %1048 = vst [vmem:[#allocation7 + $0x18] sm:$0xff] %v1044
    // Predicated region
    $region30: #{facegrid_forward.1} parent=1 // pred_check
      _
    $region31: #{facegrid_forward.1} parent=1 // pred_check_branch
      %1050 = sbr.rel (0) target = $region33
    $region32: #{facegrid_forward.1} parent=1 // pred_region
      %s1052 = ssub.s32 512, 32
      %1053 = vsyncadd [#allocation4], %s1052
      %s1054 = sshll.u32 [#allocation7], 4
      %s1055 = int_to_ptr.vmem [resolvable:$true] %s1054
      %1060 = dma.vmem_to_hbm [thread:$0]  %s1055, 32, %s5, [#allocation4], 32, 32, 2
    $region33: #{facegrid_forward.1} parent=1 // pred_fallthru
      _
    // Predicated region
    $region34: #{facegrid_forward.1} parent=1 // pred_check
      _
    $region35: #{facegrid_forward.1} parent=1 // pred_check_branch
      %1062 = sbr.rel (0) target = $region37
    $region36: #{facegrid_forward.1} parent=1 // pred_region
      %1063 = dma.done [#allocation4], 512
    $region37: #{facegrid_forward.1} parent=1 // pred_fallthru
      _
    %1064 = vsyncpa [#allocation3], 1
    %1065 = vsyncpa [#allocation6], 1
    %1066 = vsyncpa [#allocation4], 1

</llo_original>
